<compile_context>
chip_gen: v7x
topology: tpu7x:2x2x1
jax: 0.10.0
libtpu: 0.0.40
codegen_flags: <defaults>
</compile_context>

<pallas_src>
import numpy as np
import jax
import jax.numpy as jnp
from jax.experimental import pallas as pl
from jax.experimental.pallas import tpu as pltpu


_MAX_UNROLL = 64  # cap on planes per grid step (bounds in-kernel loop unrolling)


def _bilinear_rows(in_size, out_size, start, count):
    """Rows [start, start+count) of the (out_size, in_size) bilinear resize matrix."""
    i = np.arange(start, start + count, dtype=np.float64)
    ratio = in_size / out_size
    c = np.clip((i + 0.5) * ratio - 0.5, 0.0, in_size - 1)
    lo = np.floor(c).astype(np.int64)
    hi = np.minimum(lo + 1, in_size - 1)
    frac = (c - lo).astype(np.float32)
    mat = np.zeros((count, in_size), dtype=np.float32)
    rows = np.arange(count)
    np.add.at(mat, (rows, lo), 1.0 - frac)
    np.add.at(mat, (rows, hi), frac)
    return mat


def _sample_crop_params(h, w, size, scale, seed):
    """Host-side randomness (numpy, no device sync). Returns (Wrow, WcolT)."""
    rng = np.random.default_rng(seed)

    def uniform(low, high):  # mirrors np.random.rand(1)[0] * (low - high) + high
        return float(rng.random()) * (low - high) + high

    s = uniform(scale[0], scale[1])
    new_w = int(np.round(w * s))   # PIL new_size[0] (width)
    new_h = int(np.round(h * s))   # PIL new_size[1] (height)
    if new_h < size or new_w < size:
        raise ValueError(
            f"scaled image ({new_h}x{new_w}) smaller than crop size {size}; "
            f"requires scale_low >= size / min(h, w)")

    # Reference semantics: ROW offset drawn from the *width* slack and COL offset
    # from the *height* slack (reproduced verbatim), then clamped so a full
    # (size, size) crop always exists.
    max_top_left = (new_w - w, new_h - h)
    row_off = int(np.round(uniform(0.0, float(max_top_left[0]))))
    col_off = int(np.round(uniform(0.0, float(max_top_left[1]))))
    row_off = max(0, min(row_off, new_h - size))
    col_off = max(0, min(col_off, new_w - size))

    wrow = _bilinear_rows(h, new_h, row_off, size)          # (size, H)
    wcol_t = _bilinear_rows(w, new_w, col_off, size).T      # (W, size), pre-transposed
    return wrow, np.ascontiguousarray(wcol_t)


def _vmem_capacity_bytes():
    """Generation-aware VMEM capacity (v5e/v6e: 128 MiB, v7x: 64 MiB)."""
    try:
        cap = int(pltpu.get_tpu_info().vmem_capacity_bytes)
        if cap > 0:
            return cap
    except Exception:
        pass
    return 64 * 1024 * 1024  # conservative (v7x-safe) default


def _plan_blocks(nc, h, w, size, in_itemsize, vmem_budget):
    """Pick planes-per-step `b` and the output layout ('planes' | 'slab').

    Priority: grid >= 2 (v7x 2-TC megacore) > lane-dense output block > largest b.
    """
    def layout_for(b):
        if size % 128 == 0:
            return "planes", True                      # (nc,size,size): lane-dense
        if (b * size) % 128 == 0 or b == nc:
            return "slab", (b * size) % 128 == 0       # (size,nc*size): lane-dense slab
        return "planes", False                         # always spec-valid fallback

    def fits(b):
        in_blk = 2 * b * h * w * in_itemsize + 2 * b * h * w   # input block (x2 buf) + bf16 copy
        out_blk = 2 * b * size * size                           # uint8 out block (x2 buf)
        wts = 4 * (size * h + w * size)                         # bf16 weights (x2 buf)
        tmp = 6 * b * h * size + 8 * size * size                # f32/bf16 intermediates
        return in_blk + out_blk + wts + tmp <= vmem_budget

    # TODO(synk): prime / awkward N*C would benefit from a ragged last block; for
    # now `b` must divide N*C exactly (b=1 always works and always fits best-effort).
    best = None
    for b in range(1, min(nc, _MAX_UNROLL) + 1):
        if nc % b:
            continue
        if b > 1 and not fits(b):
            continue
        layout, dense = layout_for(b)
        multi = (nc // b) >= 2 or nc == 1
        key = (multi, dense, b)
        if best is None or key > best[0]:
            best = (key, b, layout)
    return best[1], best[2]


def _make_kernel(b, h, size, layout, rows_fused):
    def kernel(wr_ref, wc_ref, img_ref, out_ref):
        wr = wr_ref[...]                                   # (size, H)  bf16, grid-resident
        wc = wc_ref[...]                                   # (W, size)  bf16, grid-resident
        if rows_fused:
            # img_ref: (B*H, W) -- all B planes in one lane-dense MXU matmul.
            tmp = jnp.dot(img_ref[...].astype(jnp.bfloat16), wc,
                          preferred_element_type=jnp.float32).astype(jnp.bfloat16)
        planes = []
        for p in range(b):
            if rows_fused:
                t_p = tmp[p * h:(p + 1) * h, :]            # (H, size) bf16, static slice
            else:
                # img_ref: (B, H, W) -- per-plane W-contraction (H not sublane-aligned).
                t_p = jnp.dot(img_ref[p].astype(jnp.bfloat16), wc,
                              preferred_element_type=jnp.float32).astype(jnp.bfloat16)
            o = jnp.dot(wr, t_p, preferred_element_type=jnp.float32)   # (size, size)
            # PIL quantizes the resized image to uint8: round-half-up + clip.
            q = jnp.clip(jnp.floor(o + 0.5), 0.0, 255.0).astype(jnp.int32)
            if layout == "planes":
                out_ref[p, :, :] = q.astype(out_ref.dtype)
            else:
                planes.append(q)
        if layout == "slab":
            out_ref[...] = jnp.concatenate(planes, axis=-1).astype(out_ref.dtype)
    return kernel


def random_resize_crop(img, size, scale, seed=0):
    """Forward pass of the PyTorch `random_resize_crop` module.

    img   : (N, C, H, W) array (float in [0, 255] or uint8-like)
    size  : int, output crop side
    scale : (low, high) scale range (low >= size / min(H, W))
    seed  : int, host-side RNG seed for scale / crop offsets
    Returns (N, C, size, size) uint8.
    """
    img = jnp.asarray(img)
    n, c, h, w = img.shape
    nc = n * c

    wrow_np, wcol_t_np = _sample_crop_params(h, w, size, scale, seed)

    itemsize = int(np.dtype(img.dtype).itemsize)
    cap = _vmem_capacity_bytes()
    budget = max(8 << 20, int(cap * 0.4))           # block-selection budget (headroom)
    b, layout = _plan_blocks(nc, h, w, size, itemsize, budget)

    # Feed the input through a FREE row-major reshape.  When H is a multiple of
    # the input dtype's sublane tile, merge planes into a 2-D (NC*H, W) slab so
    # the kernel's first matmul covers all B planes at once.
    sub_req = max(8, 32 // max(1, itemsize))        # 8 for f32, 16 for bf16, 32 for u8
    rows_fused = (h % sub_req == 0)

    wrow = jnp.asarray(wrow_np, dtype=jnp.bfloat16)      # (size, H)
    wcol_t = jnp.asarray(wcol_t_np, dtype=jnp.bfloat16)  # (W, size)

    if rows_fused:
        x_in = img.reshape(nc * h, w)
        img_spec = pl.BlockSpec((b * h, w), lambda i: (i, 0))
    else:
        x_in = img.reshape(nc, h, w)
        img_spec = pl.BlockSpec((b, h, w), lambda i: (i, 0, 0))

    if layout == "planes":
        out_shape = jax.ShapeDtypeStruct((nc, size, size), jnp.uint8)
        out_spec = pl.BlockSpec((b, size, size), lambda i: (i, 0, 0))
    else:
        out_shape = jax.ShapeDtypeStruct((size, nc * size), jnp.uint8)
        out_spec = pl.BlockSpec((size, b * size), lambda i: (0, i))

    flops = 2 * nc * size * h * w + 2 * nc * size * size * h
    bytes_accessed = (x_in.size * itemsize
                      + (size * h + w * size) * 2
                      + nc * size * size)

    out = pl.pallas_call(
        _make_kernel(b, h, size, layout, rows_fused),
        out_shape=out_shape,
        grid=(nc // b,),
        in_specs=[
            pl.BlockSpec((size, h), lambda i: (0, 0)),     # Wrow   (grid-resident)
            pl.BlockSpec((w, size), lambda i: (0, 0)),     # WcolT  (grid-resident)
            img_spec,                                      # B planes per step
        ],
        out_specs=out_spec,
        compiler_params=pltpu.CompilerParams(
            dimension_semantics=("parallel",),
            vmem_limit_bytes=int(min(cap * 3 // 4, cap - (8 << 20))),
        ),
        cost_estimate=pl.CostEstimate(flops=int(flops), transcendentals=0,
                                      bytes_accessed=int(bytes_accessed)),
    )(wrow, wcol_t, x_in)

    # TODO(synk): the reference returns a PIL.Image; we return the equivalent uint8 array.
    if layout == "planes":
        return out.reshape(n, c, size, size)
    # Lane-dense slab (size, NC*size) -> (N, C, size, size); output is small, so this
    # post-kernel transpose is cheap relative to the input read.
    return out.reshape(size, nc, size).transpose(1, 0, 2).reshape(n, c, size, size)


if __name__ == "__main__":
    key = jax.random.PRNGKey(0)
    # small NCHW image batch with uint8-like values
    x = jax.random.uniform(key, (2, 4, 16, 16), jnp.float32) * 255.0

    out = random_resize_crop(x, size=16, scale=(1.0, 1.5), seed=0)
    out = jax.block_until_ready(out)

    assert out.shape == (2, 4, 16, 16), out.shape
    assert out.dtype == jnp.uint8, out.dtype

    # Pure-numpy reference (same host-drawn params), f64 math; kernel uses bf16
    # matmul inputs, so allow a couple of counts of slack after uint8 rounding.
    wrow_np, wcol_t_np = _sample_crop_params(16, 16, 16, (1.0, 1.5), seed=0)
    x_np = np.asarray(x, dtype=np.float64).reshape(8, 16, 16)
    ref = np.einsum("sh,phw,wc->psc", wrow_np.astype(np.float64), x_np,
                    wcol_t_np.astype(np.float64))
    ref = np.clip(np.floor(ref + 0.5), 0.0, 255.0)
    got = np.asarray(out, dtype=np.float64).reshape(8, 16, 16)
    max_err = float(np.max(np.abs(got - ref)))
    assert max_err <= 3.0, f"max abs error vs reference: {max_err}"

    print("KERNEL_OK")
</pallas_src>

<mosaic_0001>
module attributes {stable_mosaic.version = 11 : i64} {
  func.func @kernel(%arg0: i32, %arg1: memref<16x16xbf16, #tpu.memory_space<vmem>>, %arg2: memref<16x16xbf16, #tpu.memory_space<vmem>>, %arg3: memref<64x16xf32, #tpu.memory_space<vmem>>, %arg4: memref<4x16x16xi8, #tpu.memory_space<vmem>>) attributes {dimension_semantics = [#tpu.dimension_semantics<parallel>], iteration_bounds = array<i64: 2>, scalar_prefetch = 0 : i64, scratch_operands = 0 : i64, tpu.core_type = #tpu.core_type<tc>, window_params = [{pipeline_mode = #tpu.pipeline_mode<synchronous>, transform_indices = @transform_0, window_bounds = array<i64: 16, 16>}, {pipeline_mode = #tpu.pipeline_mode<synchronous>, transform_indices = @transform_1, window_bounds = array<i64: 16, 16>}, {transform_indices = @transform_2, window_bounds = array<i64: 64, 16>}, {transform_indices = @transform_3, window_bounds = array<i64: 4, 16, 16>}]} {
    %c0 = arith.constant 0 : index
    %c0_0 = arith.constant 0 : index
    %0 = vector.load %arg1[%c0, %c0_0] : memref<16x16xbf16, #tpu.memory_space<vmem>>, vector<16x16xbf16>
    %c0_1 = arith.constant 0 : index
    %c0_2 = arith.constant 0 : index
    %1 = vector.load %arg2[%c0_1, %c0_2] : memref<16x16xbf16, #tpu.memory_space<vmem>>, vector<16x16xbf16>
    %c0_3 = arith.constant 0 : index
    %c0_4 = arith.constant 0 : index
    %2 = vector.load %arg3[%c0_3, %c0_4] : memref<64x16xf32, #tpu.memory_space<vmem>>, vector<64x16xf32>
    %3 = arith.truncf %2 : vector<64x16xf32> to vector<64x16xbf16>
    %cst = arith.constant dense<0.000000e+00> : vector<64x16xf32>
    %4 = tpu.matmul %3, %1, %cst {dimension_numbers = #tpu.dot_dimension_numbers<[1], [0], [0], [1], [0, 0, 1, 1], [], []>} : vector<64x16xbf16>, vector<16x16xbf16>, vector<64x16xf32> -> vector<64x16xf32>
    %5 = arith.truncf %4 : vector<64x16xf32> to vector<64x16xbf16>
    %6 = vector.extract_strided_slice %5 {offsets = [0, 0], sizes = [16, 16], strides = [1, 1]} : vector<64x16xbf16> to vector<16x16xbf16>
    %cst_5 = arith.constant dense<0.000000e+00> : vector<16x16xf32>
    %7 = tpu.matmul %0, %6, %cst_5 {dimension_numbers = #tpu.dot_dimension_numbers<[1], [0], [0], [1], [0, 0, 1, 1], [], []>} : vector<16x16xbf16>, vector<16x16xbf16>, vector<16x16xf32> -> vector<16x16xf32>
    %cst_6 = arith.constant 5.000000e-01 : f32
    %8 = vector.broadcast %cst_6 : f32 to vector<16x16xf32>
    %9 = arith.addf %7, %8 : vector<16x16xf32>
    %10 = math.floor %9 : vector<16x16xf32>
    %cst_7 = arith.constant 0.000000e+00 : f32
    %cst_8 = arith.constant 2.550000e+02 : f32
    %11 = vector.broadcast %cst_7 : f32 to vector<16x16xf32>
    %12 = arith.maximumf %11, %10 : vector<16x16xf32>
    %13 = vector.broadcast %cst_8 : f32 to vector<16x16xf32>
    %14 = arith.minimumf %13, %12 : vector<16x16xf32>
    %15 = arith.fptosi %14 : vector<16x16xf32> to vector<16x16xi32>
    %16 = arith.trunci %15 : vector<16x16xi32> to vector<16x16xi8>
    %c0_9 = arith.constant 0 : index
    %c0_10 = arith.constant 0 : index
    %c0_11 = arith.constant 0 : index
    %17 = vector.load %arg4[%c0_9, %c0_10, %c0_11] : memref<4x16x16xi8, #tpu.memory_space<vmem>>, vector<1x16x16xi8>
    %18 = vector.shape_cast %17 : vector<1x16x16xi8> to vector<16x16xi8>
    %19 = vector.shape_cast %16 : vector<16x16xi8> to vector<1x16x16xi8>
    tpu.vector_store %arg4[%c0_9, %c0_10, %c0_11], %19 {strides = array<i32>} : memref<4x16x16xi8, #tpu.memory_space<vmem>>, vector<1x16x16xi8>,
    %20 = vector.extract_strided_slice %5 {offsets = [16, 0], sizes = [16, 16], strides = [1, 1]} : vector<64x16xbf16> to vector<16x16xbf16>
    %cst_12 = arith.constant dense<0.000000e+00> : vector<16x16xf32>
    %21 = tpu.matmul %0, %20, %cst_12 {dimension_numbers = #tpu.dot_dimension_numbers<[1], [0], [0], [1], [0, 0, 1, 1], [], []>} : vector<16x16xbf16>, vector<16x16xbf16>, vector<16x16xf32> -> vector<16x16xf32>
    %cst_13 = arith.constant 5.000000e-01 : f32
    %22 = vector.broadcast %cst_13 : f32 to vector<16x16xf32>
    %23 = arith.addf %21, %22 : vector<16x16xf32>
    %24 = math.floor %23 : vector<16x16xf32>
    %cst_14 = arith.constant 0.000000e+00 : f32
    %cst_15 = arith.constant 2.550000e+02 : f32
    %25 = vector.broadcast %cst_14 : f32 to vector<16x16xf32>
    %26 = arith.maximumf %25, %24 : vector<16x16xf32>
    %27 = vector.broadcast %cst_15 : f32 to vector<16x16xf32>
    %28 = arith.minimumf %27, %26 : vector<16x16xf32>
    %29 = arith.fptosi %28 : vector<16x16xf32> to vector<16x16xi32>
    %30 = arith.trunci %29 : vector<16x16xi32> to vector<16x16xi8>
    %c1 = arith.constant 1 : index
    %c0_16 = arith.constant 0 : index
    %c0_17 = arith.constant 0 : index
    %31 = vector.load %arg4[%c1, %c0_16, %c0_17] : memref<4x16x16xi8, #tpu.memory_space<vmem>>, vector<1x16x16xi8>
    %32 = vector.shape_cast %31 : vector<1x16x16xi8> to vector<16x16xi8>
    %33 = vector.shape_cast %30 : vector<16x16xi8> to vector<1x16x16xi8>
    tpu.vector_store %arg4[%c1, %c0_16, %c0_17], %33 {strides = array<i32>} : memref<4x16x16xi8, #tpu.memory_space<vmem>>, vector<1x16x16xi8>,
    %34 = vector.extract_strided_slice %5 {offsets = [32, 0], sizes = [16, 16], strides = [1, 1]} : vector<64x16xbf16> to vector<16x16xbf16>
    %cst_18 = arith.constant dense<0.000000e+00> : vector<16x16xf32>
    %35 = tpu.matmul %0, %34, %cst_18 {dimension_numbers = #tpu.dot_dimension_numbers<[1], [0], [0], [1], [0, 0, 1, 1], [], []>} : vector<16x16xbf16>, vector<16x16xbf16>, vector<16x16xf32> -> vector<16x16xf32>
    %cst_19 = arith.constant 5.000000e-01 : f32
    %36 = vector.broadcast %cst_19 : f32 to vector<16x16xf32>
    %37 = arith.addf %35, %36 : vector<16x16xf32>
    %38 = math.floor %37 : vector<16x16xf32>
    %cst_20 = arith.constant 0.000000e+00 : f32
    %cst_21 = arith.constant 2.550000e+02 : f32
    %39 = vector.broadcast %cst_20 : f32 to vector<16x16xf32>
    %40 = arith.maximumf %39, %38 : vector<16x16xf32>
    %41 = vector.broadcast %cst_21 : f32 to vector<16x16xf32>
    %42 = arith.minimumf %41, %40 : vector<16x16xf32>
    %43 = arith.fptosi %42 : vector<16x16xf32> to vector<16x16xi32>
    %44 = arith.trunci %43 : vector<16x16xi32> to vector<16x16xi8>
    %c2 = arith.constant 2 : index
    %c0_22 = arith.constant 0 : index
    %c0_23 = arith.constant 0 : index
    %45 = vector.load %arg4[%c2, %c0_22, %c0_23] : memref<4x16x16xi8, #tpu.memory_space<vmem>>, vector<1x16x16xi8>
    %46 = vector.shape_cast %45 : vector<1x16x16xi8> to vector<16x16xi8>
    %47 = vector.shape_cast %44 : vector<16x16xi8> to vector<1x16x16xi8>
    tpu.vector_store %arg4[%c2, %c0_22, %c0_23], %47 {strides = array<i32>} : memref<4x16x16xi8, #tpu.memory_space<vmem>>, vector<1x16x16xi8>,
    %48 = vector.extract_strided_slice %5 {offsets = [48, 0], sizes = [16, 16], strides = [1, 1]} : vector<64x16xbf16> to vector<16x16xbf16>
    %cst_24 = arith.constant dense<0.000000e+00> : vector<16x16xf32>
    %49 = tpu.matmul %0, %48, %cst_24 {dimension_numbers = #tpu.dot_dimension_numbers<[1], [0], [0], [1], [0, 0, 1, 1], [], []>} : vector<16x16xbf16>, vector<16x16xbf16>, vector<16x16xf32> -> vector<16x16xf32>
    %cst_25 = arith.constant 5.000000e-01 : f32
    %50 = vector.broadcast %cst_25 : f32 to vector<16x16xf32>
    %51 = arith.addf %49, %50 : vector<16x16xf32>
    %52 = math.floor %51 : vector<16x16xf32>
    %cst_26 = arith.constant 0.000000e+00 : f32
    %cst_27 = arith.constant 2.550000e+02 : f32
    %53 = vector.broadcast %cst_26 : f32 to vector<16x16xf32>
    %54 = arith.maximumf %53, %52 : vector<16x16xf32>
    %55 = vector.broadcast %cst_27 : f32 to vector<16x16xf32>
    %56 = arith.minimumf %55, %54 : vector<16x16xf32>
    %57 = arith.fptosi %56 : vector<16x16xf32> to vector<16x16xi32>
    %58 = arith.trunci %57 : vector<16x16xi32> to vector<16x16xi8>
    %c3 = arith.constant 3 : index
    %c0_28 = arith.constant 0 : index
    %c0_29 = arith.constant 0 : index
    %59 = vector.load %arg4[%c3, %c0_28, %c0_29] : memref<4x16x16xi8, #tpu.memory_space<vmem>>, vector<1x16x16xi8>
    %60 = vector.shape_cast %59 : vector<1x16x16xi8> to vector<16x16xi8>
    %61 = vector.shape_cast %58 : vector<16x16xi8> to vector<1x16x16xi8>
    tpu.vector_store %arg4[%c3, %c0_28, %c0_29], %61 {strides = array<i32>} : memref<4x16x16xi8, #tpu.memory_space<vmem>>, vector<1x16x16xi8>,
    return
  }
  func.func @transform_0(%arg0: i32) -> (i32, i32) {
    %c0_i32 = arith.constant 0 : i32
    %c0_i32_0 = arith.constant 0 : i32
    %c0_i32_1 = arith.constant 0 : i32
    return %c0_i32, %c0_i32_0 : i32, i32
  }
  func.func @transform_1(%arg0: i32) -> (i32, i32) {
    %c0_i32 = arith.constant 0 : i32
    %c0_i32_0 = arith.constant 0 : i32
    %c0_i32_1 = arith.constant 0 : i32
    return %c0_i32, %c0_i32_0 : i32, i32
  }
  func.func @transform_2(%arg0: i32) -> (i32, i32) {
    %c0_i32 = arith.constant 0 : i32
    %c0_i32_0 = arith.constant 0 : i32
    return %arg0, %c0_i32 : i32, i32
  }
  func.func @transform_3(%arg0: i32) -> (i32, i32, i32) {
    %c0_i32 = arith.constant 0 : i32
    %c0_i32_0 = arith.constant 0 : i32
    %c0_i32_1 = arith.constant 0 : i32
    return %arg0, %c0_i32, %c0_i32_0 : i32, i32, i32
  }
}

</mosaic_0001>

<llo_original>
// kernel: tpu_custom_call.1
$region0: #{tpu_custom_call.1}
  #allocation0 [shape = 'u32[]', space=smem, size = 0x4, offset = 0x4, fixed_abs, tag = 'smem constant byte address 0x4 - core index']
  #allocation1 [shape = 'u32[144,128]{1,0:T(1,128)}', space=vmem, size = 0x12000, scoped, tag = 'internal scratch']
  %s0 = inlined_call_operand.vmem [shape: bf16[16,16], index: 0, kind: input, shape index: {}]
  %s1 = inlined_call_operand.vmem [shape: bf16[16,16], index: 1, kind: input, shape index: {}]
  %s2 = inlined_call_operand.vmem [shape: f32[128,16], index: 2, kind: input, shape index: {}]
  %s3 = inlined_call_operand.hbm [shape: u8[8,16,16], index: 3, kind: output, shape index: {}]
  %s4 = sld [smem:[#allocation0]]
  $region45: #{tpu_custom_call.1} parent=0
    _
  %s6 = ssub.s32 1, %s4
  %s7 = scalar_select 0, %s6, %s4
  $region1: #{tpu_custom_call.1} parent=0
    #allocation2 [shape = 'u8[16384]{0}', space=vmem, size = 0x4000, scoped, tag = 'output window, operand 0']
    #allocation3 [shape = 's32[2]{0}', space=sflag, size = 0x8, scoped, tag = 'scoped memory for tpu_custom_call.1']
    %8 = vsyncpa [#allocation3], 0
    %s9 = scalar_lea.sflag [#allocation3], 1
    %10 = vsyncpa %s9, 0
    loop: start=0, step=1, limit=4
    $region2: #{tpu_custom_call.1} parent=1 // loop_pre_header
      _
    $region3: #{tpu_custom_call.1} parent=1 // loop_header
      %s12 = sphi 0, %s16
      %p13 = scmp.ge.s32.totalorder %s12, 4
      %s20 = sphi 0, %s20
      %s22 = sphi 0, %s20
      %s23 = sphi 0, %s22
      %s37 = sphi 0, %s23
      %s41 = sphi 0, %s41
      %s43 = sphi 0, %s41
      %s44 = sphi 0, %s43
      %s58 = sphi 0, %s44
      %s64 = sphi 0, %s66
      %s67 = sphi 0, %s64
      %s68 = sphi 0, %s67
      %s84 = sphi 0, %s68
      %s90 = sphi 0, %s92
      %s93 = sphi 0, %s90
      %s94 = sphi 0, %s93
      %s110 = sphi 0, %s94
    $region4: #{tpu_custom_call.1} parent=1 // loop_header_branch
      %15 = sbr.rel (%p13) target = $region8
    $region5: #{tpu_custom_call.1} parent=1 // loop_body
      %s17 = ssub.s32 %s12, 1
      %s18 = ssub.s32 %s12, 2
      %s19 = sadd.s32 %s12, 1
      %s21 = sadd.s32 %s20, 1
      %p24 = scmp.eq.s32.totalorder %s12, 1
      %p25 = scmp.ne.s32.totalorder %s20, %s22
      %p26 = scmp.eq.s32.totalorder %s12, 0
      %p27 = por %p25, %p26
      %p28 = scmp.ne.s32.totalorder %s20, %s22
      %p29 = scmp.eq.s32.totalorder %s17, 1
      %p30 = por %p28, %p29
      %p31 = scmp.ne.s32.totalorder %s22, %s23
      %p32 = scmp.eq.s32.totalorder %s17, 0
      %p33 = por %p31, %p32
      %p34 = scmp.ne.s32.totalorder %s22, %s23
      %p35 = scmp.eq.s32.totalorder %s18, 1
      %p36 = por %p34, %p35
      %p38 = scmp.ne.s32.totalorder %s23, %s37
      %p39 = scmp.eq.s32.totalorder %s18, 0
      %p40 = por %p38, %p39
      %s42 = sadd.s32 %s41, 1
      %p45 = scmp.eq.s32.totalorder %s12, 1
      %p46 = scmp.ne.s32.totalorder %s41, %s43
      %p47 = scmp.eq.s32.totalorder %s12, 0
      %p48 = por %p46, %p47
      %p49 = scmp.ne.s32.totalorder %s41, %s43
      %p50 = scmp.eq.s32.totalorder %s17, 1
      %p51 = por %p49, %p50
      %p52 = scmp.ne.s32.totalorder %s43, %s44
      %p53 = scmp.eq.s32.totalorder %s17, 0
      %p54 = por %p52, %p53
      %p55 = scmp.ne.s32.totalorder %s43, %s44
      %p56 = scmp.eq.s32.totalorder %s18, 1
      %p57 = por %p55, %p56
      %p59 = scmp.ne.s32.totalorder %s44, %s58
      %p60 = scmp.eq.s32.totalorder %s18, 0
      %p61 = por %p59, %p60
      %s62 = ssub.s32 %s12, %s19
      %p63 = scmp.eq.s32.totalorder %s62, 0
      %s65 = sadd.s32 %s64, 1
      %s66 = scalar_select %p63, %s64, %s65
      %p69 = pneg %p63
      %p70 = scmp.eq.s32.totalorder %s12, 1
      %p71 = por %p69, %p70
      %p72 = scmp.ne.s32.totalorder %s64, %s67
      %p73 = scmp.eq.s32.totalorder %s12, 0
      %p74 = por %p72, %p73
      %p75 = scmp.ne.s32.totalorder %s64, %s67
      %p76 = scmp.eq.s32.totalorder %s17, 1
      %p77 = por %p75, %p76
      %p78 = scmp.ne.s32.totalorder %s67, %s68
      %p79 = scmp.eq.s32.totalorder %s17, 0
      %p80 = por %p78, %p79
      %p81 = scmp.ne.s32.totalorder %s67, %s68
      %p82 = scmp.eq.s32.totalorder %s18, 1
      %p83 = por %p81, %p82
      %p85 = scmp.ne.s32.totalorder %s68, %s84
      %p86 = scmp.eq.s32.totalorder %s18, 0
      %p87 = por %p85, %p86
      %s88 = ssub.s32 %s12, %s19
      %p89 = scmp.eq.s32.totalorder %s88, 0
      %s91 = sadd.s32 %s90, 1
      %s92 = scalar_select %p89, %s90, %s91
      %p95 = pneg %p89
      %p96 = scmp.eq.s32.totalorder %s12, 1
      %p97 = por %p95, %p96
      %p98 = scmp.ne.s32.totalorder %s90, %s93
      %p99 = scmp.eq.s32.totalorder %s12, 0
      %p100 = por %p98, %p99
      %p101 = scmp.ne.s32.totalorder %s90, %s93
      %p102 = scmp.eq.s32.totalorder %s17, 1
      %p103 = por %p101, %p102
      %p104 = scmp.ne.s32.totalorder %s93, %s94
      %p105 = scmp.eq.s32.totalorder %s17, 0
      %p106 = por %p104, %p105
      %p107 = scmp.ne.s32.totalorder %s93, %s94
      %p108 = scmp.eq.s32.totalorder %s18, 1
      %p109 = por %p107, %p108
      %p111 = scmp.ne.s32.totalorder %s94, %s110
      %p112 = scmp.eq.s32.totalorder %s18, 0
      %p113 = por %p111, %p112
      %p114 = scmp.le.s32.totalorder 1, %s12
      %p115 = scmp.lt.s32.totalorder %s12, 3
      %p116 = pnand %p114, %p115
      %p117 = pneg %p116
      // Predicated region
      $region9: #{tpu_custom_call.1} parent=5 // pred_check
        _
      $region10: #{tpu_custom_call.1} parent=5 // pred_check_branch
        %119 = sbr.rel (%p116) target = $region12
      $region11: #{tpu_custom_call.1} parent=5 // pred_region
        %s120 = ssub.s32 %s12, 1
        // Predicated region
        $region13: #{tpu_custom_call.1} parent=11 // pred_check
          %p121 = pneg %p33
        $region14: #{tpu_custom_call.1} parent=11 // pred_check_branch
          %123 = sbr.rel (%p121) target = $region16
        $region15: #{tpu_custom_call.1} parent=11 // pred_region
          _
        $region16: #{tpu_custom_call.1} parent=11 // pred_fallthru
          _
        // Predicated region
        $region17: #{tpu_custom_call.1} parent=11 // pred_check
          %p124 = pneg %p54
        $region18: #{tpu_custom_call.1} parent=11 // pred_check_branch
          %126 = sbr.rel (%p124) target = $region20
        $region19: #{tpu_custom_call.1} parent=11 // pred_region
          _
        $region20: #{tpu_custom_call.1} parent=11 // pred_fallthru
          _
      $region12: #{tpu_custom_call.1} parent=5 // pred_fallthru
        _
      %p127 = scmp.lt.s32.totalorder %s12, 2
      // Predicated region
      $region21: #{tpu_custom_call.1} parent=5 // pred_check
        %p128 = pneg %p127
      $region22: #{tpu_custom_call.1} parent=5 // pred_check_branch
        %130 = sbr.rel (%p128) target = $region24
      $region23: #{tpu_custom_call.1} parent=5 // pred_region
        // Predicated region
        $region25: #{tpu_custom_call.1} parent=23 // pred_check
          %p131 = pneg %p74
        $region26: #{tpu_custom_call.1} parent=23 // pred_check_branch
          %133 = sbr.rel (%p131) target = $region28
        $region27: #{tpu_custom_call.1} parent=23 // pred_region
          %s134 = smul.u32 8, %s12
          %p135 = scmp.lt.s32.totalorder %s134, 15
          %s136 = scalar_select %p135, %s134, 15
          %s137 = smul.addr %s136, 8
          %s138 = scalar_lea.vmem %s2, %s137
          %s139 = smul.u32 8, %s12
        $region28: #{tpu_custom_call.1} parent=23 // pred_fallthru
          _
      $region24: #{tpu_custom_call.1} parent=5 // pred_fallthru
        _
      %p140 = scmp.le.s32.totalorder 1, %s12
      %p141 = scmp.lt.s32.totalorder %s12, 3
      %p142 = pnand %p140, %p141
      %p143 = pneg %p142
      // Predicated region
      $region29: #{tpu_custom_call.1} parent=5 // pred_check
        _
      $region30: #{tpu_custom_call.1} parent=5 // pred_check_branch
        %145 = sbr.rel (%p142) target = $region32
      $region31: #{tpu_custom_call.1} parent=5 // pred_region
        %s146 = ssub.s32 %s12, 1
        %p147 = pneg %p33
        %p148 = pneg %p30
        %p149 = pneg %p54
        %p150 = pneg %p51
        %s151 = smul.u32 8, %s17
        %p152 = scmp.lt.s32.totalorder %s151, 15
        %s153 = scalar_select %p152, %s151, 15
        %s154 = smul.addr %s153, 8
        %s155 = scalar_lea.vmem %s2, %s154
        %p156 = pneg %p80
        %p157 = pneg %p77
        %p158 = pneg %p106
        %p159 = pneg %p103
        %s160 = sand.u32 %s93, 1
        %s161 = scalar_lea.sflag [#allocation3], %s160
        %s162 = sand.u32 %s93, 1
        %s163 = smul.addr %s162, 16
        %s164 = scalar_lea.vmem [#allocation2], %s163
        %s165 = smul.u32 8, %s17
        %p166 = scmp.lt.s32.totalorder %s165, 15
        %s167 = scalar_select %p166, %s165, 15
        %s168 = smul.addr %s167, 8
        %s169 = scalar_lea.vmem %s2, %s168
        %s170 = smul.u32 8, %s17
        %s171 = smul.u32 4, %s17
        %v173 = vld [vmem:[%s0] sm:$0xf]
        %v174 = vld [vmem:[%s0 + $0x4] sm:$0xf]
        %v175 = vld [vmem:[%s1] sm:$0xf]
        %v176 = vld [vmem:[%s1 + $0x4] sm:$0xf]
        %v177 = vld [vmem:[%s169] sm:$0xff]
        %v178 = vld [vmem:[%s169 + $0x8] sm:$0xff]
        %v179 = vld [vmem:[%s169 + $0x10] sm:$0xff]
        %v180 = vld [vmem:[%s169 + $0x18] sm:$0xff]
        %v181 = vld [vmem:[%s169 + $0x20] sm:$0xff]
        %v182 = vld [vmem:[%s169 + $0x28] sm:$0xff]
        %v183 = vld [vmem:[%s169 + $0x30] sm:$0xff]
        %v184 = vld [vmem:[%s169 + $0x38] sm:$0xff]
        %v185 = vpack.c.bf16 %v178, %v177
        %v186 = vpack.c.bf16 %v180, %v179
        %v187 = vpack.c.bf16 %v182, %v181
        %v188 = vpack.c.bf16 %v184, %v183
        %v191 = vunpack.c.l.b16 %v175
        %v192 = vunpack.c.l.b16 %v176
        %v193 = vpack.c.b16 %v192, %v191
        %vm195 = vcmask 130048
        %v197 = vsel %vm195, %v185, 0
        %v200 = vsel %vm195, %v186, 0
        %v203 = vsel %vm195, %v187, 0
        %v206 = vsel %vm195, %v188, 0
        %208 = vmatprep.subr.bf16.mxu0 0
        %209 = vmatpush1.bf16.msra.mxu0 %v193
        %210 = vmatprep.subr.bf16.mxu0 0
        %211 = vmatpush1.bf16.msra.mxu0 0
        %212 = vmatprep.subr.bf16.mxu0 0
        %213 = vmatpush1.bf16.msra.mxu0 0
        %214 = vmatprep.subr.bf16.mxu0 0
        %215 = vmatpush1.bf16.msra.mxu0 0
        %216 = vmatprep.subr.bf16.mxu0 0
        %217 = vmatpush1.bf16.msra.mxu0 0
        %218 = vmatprep.subr.bf16.mxu0 0
        %219 = vmatpush1.bf16.msra.mxu0 0
        %220 = vmatprep.subr.bf16.mxu0 0
        %221 = vmatpush1.bf16.msra.mxu0 0
        %222 = vmatprep.subr.bf16.mxu0 0
        %223 = vmatpush1.bf16.msra.mxu0 0
        %224 = vmatprep.subr.bf16.mxu0 0
        %225 = vmatpush1.bf16.msra.mxu0 0
        %226 = vmatprep.subr.bf16.mxu0 0
        %227 = vmatpush1.bf16.msra.mxu0 0
        %228 = vmatprep.subr.bf16.mxu0 0
        %229 = vmatpush1.bf16.msra.mxu0 0
        %230 = vmatprep.subr.bf16.mxu0 0
        %231 = vmatpush1.bf16.msra.mxu0 0
        %232 = vmatprep.subr.bf16.mxu0 0
        %233 = vmatpush1.bf16.msra.mxu0 0
        %234 = vmatprep.subr.bf16.mxu0 0
        %235 = vmatpush1.bf16.msra.mxu0 0
        %236 = vmatprep.subr.bf16.mxu0 0
        %237 = vmatpush1.bf16.msra.mxu0 0
        %238 = vmatprep.subr.bf16.mxu0 0
        %239 = vmatpush1.bf16.msra.mxu0 0
        %240 = vmatprep.mubr.bf16.mxu0 0
        %241 = vmatmul.mubr.bf16.gmra.mrb[0].mxu0 %v197
        %v242 = vpop.f32.mrb[0].mxu0
        %v243 = vadd.f32 0.0, %v242
        %v244 = vpop.f32.mrb[0].mxu0
        %v245 = vpop.f32.mrb[0].mxu0
        %v246 = vadd.f32 0.0, %v245
        %v247 = vpop.f32.mrb[0].mxu0
        %248 = vmatprep.mubr.bf16.mxu0 0
        %249 = vmatmul.mubr.bf16.gmra.mrb[0].mxu0 %v200
        %v250 = vpop.f32.mrb[0].mxu0
        %v251 = vadd.f32 0.0, %v250
        %v252 = vpop.f32.mrb[0].mxu0
        %v253 = vpop.f32.mrb[0].mxu0
        %v254 = vadd.f32 0.0, %v253
        %v255 = vpop.f32.mrb[0].mxu0
        %256 = vmatprep.mubr.bf16.mxu0 0
        %257 = vmatmul.mubr.bf16.gmra.mrb[0].mxu0 %v203
        %v258 = vpop.f32.mrb[0].mxu0
        %v259 = vadd.f32 0.0, %v258
        %v260 = vpop.f32.mrb[0].mxu0
        %v261 = vpop.f32.mrb[0].mxu0
        %v262 = vadd.f32 0.0, %v261
        %v263 = vpop.f32.mrb[0].mxu0
        %264 = vmatprep.mubr.bf16.mxu0 0
        %265 = vmatmul.mubr.bf16.gmra.mrb[0].mxu0 %v206
        %v266 = vpop.f32.mrb[0].mxu0
        %v267 = vadd.f32 0.0, %v266
        %v268 = vpop.f32.mrb[0].mxu0
        %v269 = vpop.f32.mrb[0].mxu0
        %v270 = vadd.f32 0.0, %v269
        %v271 = vpop.f32.mrb[0].mxu0
        %272 = vdwg.mxu0
        %v273 = vpack.c.bf16 %v246, %v243
        %v274 = vpack.c.bf16 %v254, %v251
        %v275 = vpack.c.bf16 %v262, %v259
        %v276 = vpack.c.bf16 %v270, %v267
        %v279 = vunpack.c.l.b16 %v173
        %v280 = vunpack.c.l.b16 %v174
        %v281 = vpack.c.b16 %v280, %v279
        %v283 = vsel %vm195, %v281, 0
        %285 = vmatprep.subr.bf16.mxu0 0
        %286 = vmatpush1.bf16.msra.mxu0 %v273
        %287 = vmatprep.subr.bf16.mxu0 0
        %288 = vmatpush1.bf16.msra.mxu0 0
        %289 = vmatprep.subr.bf16.mxu0 0
        %290 = vmatpush1.bf16.msra.mxu0 0
        %291 = vmatprep.subr.bf16.mxu0 0
        %292 = vmatpush1.bf16.msra.mxu0 0
        %293 = vmatprep.subr.bf16.mxu0 0
        %294 = vmatpush1.bf16.msra.mxu0 0
        %295 = vmatprep.subr.bf16.mxu0 0
        %296 = vmatpush1.bf16.msra.mxu0 0
        %297 = vmatprep.subr.bf16.mxu0 0
        %298 = vmatpush1.bf16.msra.mxu0 0
        %299 = vmatprep.subr.bf16.mxu0 0
        %300 = vmatpush1.bf16.msra.mxu0 0
        %301 = vmatprep.subr.bf16.mxu0 0
        %302 = vmatpush1.bf16.msra.mxu0 0
        %303 = vmatprep.subr.bf16.mxu0 0
        %304 = vmatpush1.bf16.msra.mxu0 0
        %305 = vmatprep.subr.bf16.mxu0 0
        %306 = vmatpush1.bf16.msra.mxu0 0
        %307 = vmatprep.subr.bf16.mxu0 0
        %308 = vmatpush1.bf16.msra.mxu0 0
        %309 = vmatprep.subr.bf16.mxu0 0
        %310 = vmatpush1.bf16.msra.mxu0 0
        %311 = vmatprep.subr.bf16.mxu0 0
        %312 = vmatpush1.bf16.msra.mxu0 0
        %313 = vmatprep.subr.bf16.mxu0 0
        %314 = vmatpush1.bf16.msra.mxu0 0
        %315 = vmatprep.subr.bf16.mxu0 0
        %316 = vmatpush1.bf16.msra.mxu0 0
        %317 = vmatprep.mubr.bf16.mxu0 0
        %318 = vmatmul.mubr.bf16.gmra.mrb[0].mxu0 %v283
        %v319 = vpop.f32.mrb[0].mxu0
        %v320 = vadd.f32 0.5, %v319
        %v321 = vpop.f32.mrb[0].mxu0
        %v322 = vpop.f32.mrb[0].mxu0
        %v323 = vadd.f32 0.5, %v322
        %v324 = vpop.f32.mrb[0].mxu0
        %325 = vdwg.mxu0
        %v326 = vfloor.f32 %v320
        %v327 = vfloor.f32 %v323
        %v328 = vmax.f32 %v326, 0.0
        %v329 = vmax.f32 %v327, 0.0
        %v330 = vmin.f32 %v328, 255.0
        %v331 = vmin.f32 %v329, 255.0
        %v332 = vcvt.f32.s32.to.zero.pseudo %v330
        %v333 = vcvt.f32.s32.to.zero.pseudo %v331
        %v334 = vpack.c.b16 %v332, %v332
        %v335 = vpack.c.b8 %v334, %v334
        %v336 = vpack.c.b16 %v333, %v333
        %v337 = vpack.c.b8 %v336, %v336
        %vm338 = vcmask 123904
        %339 = vst.msk [vmem:[%s164] sm:$0x3] %vm338, %v335
        %340 = vst.msk [vmem:[%s164 + $0x2] sm:$0x3] %vm338, %v337
        %341 = vmatprep.subr.bf16.mxu0 0
        %342 = vmatpush1.bf16.msra.mxu0 %v274
        %343 = vmatprep.subr.bf16.mxu0 0
        %344 = vmatpush1.bf16.msra.mxu0 0
        %345 = vmatprep.subr.bf16.mxu0 0
        %346 = vmatpush1.bf16.msra.mxu0 0
        %347 = vmatprep.subr.bf16.mxu0 0
        %348 = vmatpush1.bf16.msra.mxu0 0
        %349 = vmatprep.subr.bf16.mxu0 0
        %350 = vmatpush1.bf16.msra.mxu0 0
        %351 = vmatprep.subr.bf16.mxu0 0
        %352 = vmatpush1.bf16.msra.mxu0 0
        %353 = vmatprep.subr.bf16.mxu0 0
        %354 = vmatpush1.bf16.msra.mxu0 0
        %355 = vmatprep.subr.bf16.mxu0 0
        %356 = vmatpush1.bf16.msra.mxu0 0
        %357 = vmatprep.subr.bf16.mxu0 0
        %358 = vmatpush1.bf16.msra.mxu0 0
        %359 = vmatprep.subr.bf16.mxu0 0
        %360 = vmatpush1.bf16.msra.mxu0 0
        %361 = vmatprep.subr.bf16.mxu0 0
        %362 = vmatpush1.bf16.msra.mxu0 0
        %363 = vmatprep.subr.bf16.mxu0 0
        %364 = vmatpush1.bf16.msra.mxu0 0
        %365 = vmatprep.subr.bf16.mxu0 0
        %366 = vmatpush1.bf16.msra.mxu0 0
        %367 = vmatprep.subr.bf16.mxu0 0
        %368 = vmatpush1.bf16.msra.mxu0 0
        %369 = vmatprep.subr.bf16.mxu0 0
        %370 = vmatpush1.bf16.msra.mxu0 0
        %371 = vmatprep.subr.bf16.mxu0 0
        %372 = vmatpush1.bf16.msra.mxu0 0
        %373 = vmatprep.mubr.bf16.mxu0 0
        %374 = vmatmul.mubr.bf16.gmra.mrb[0].mxu0 %v283
        %v375 = vpop.f32.mrb[0].mxu0
        %v376 = vadd.f32 0.5, %v375
        %v377 = vpop.f32.mrb[0].mxu0
        %v378 = vpop.f32.mrb[0].mxu0
        %v379 = vadd.f32 0.5, %v378
        %v380 = vpop.f32.mrb[0].mxu0
        %381 = vdwg.mxu0
        %v382 = vfloor.f32 %v376
        %v383 = vfloor.f32 %v379
        %v384 = vmax.f32 %v382, 0.0
        %v385 = vmax.f32 %v383, 0.0
        %v386 = vmin.f32 %v384, 255.0
        %v387 = vmin.f32 %v385, 255.0
        %v388 = vcvt.f32.s32.to.zero.pseudo %v386
        %v389 = vcvt.f32.s32.to.zero.pseudo %v387
        %v390 = vpack.c.b16 %v388, %v388
        %v391 = vpack.c.b8 %v390, %v390
        %v392 = vpack.c.b16 %v389, %v389
        %v393 = vpack.c.b8 %v392, %v392
        %s394 = scalar_lea.vmem %s164, 4 [#allocation2]
        %395 = vst.msk [vmem:[%s394] sm:$0x3] %vm338, %v391
        %396 = vst.msk [vmem:[%s394 + $0x2] sm:$0x3] %vm338, %v393
        %397 = vmatprep.subr.bf16.mxu0 0
        %398 = vmatpush1.bf16.msra.mxu0 %v275
        %399 = vmatprep.subr.bf16.mxu0 0
        %400 = vmatpush1.bf16.msra.mxu0 0
        %401 = vmatprep.subr.bf16.mxu0 0
        %402 = vmatpush1.bf16.msra.mxu0 0
        %403 = vmatprep.subr.bf16.mxu0 0
        %404 = vmatpush1.bf16.msra.mxu0 0
        %405 = vmatprep.subr.bf16.mxu0 0
        %406 = vmatpush1.bf16.msra.mxu0 0
        %407 = vmatprep.subr.bf16.mxu0 0
        %408 = vmatpush1.bf16.msra.mxu0 0
        %409 = vmatprep.subr.bf16.mxu0 0
        %410 = vmatpush1.bf16.msra.mxu0 0
        %411 = vmatprep.subr.bf16.mxu0 0
        %412 = vmatpush1.bf16.msra.mxu0 0
        %413 = vmatprep.subr.bf16.mxu0 0
        %414 = vmatpush1.bf16.msra.mxu0 0
        %415 = vmatprep.subr.bf16.mxu0 0
        %416 = vmatpush1.bf16.msra.mxu0 0
        %417 = vmatprep.subr.bf16.mxu0 0
        %418 = vmatpush1.bf16.msra.mxu0 0
        %419 = vmatprep.subr.bf16.mxu0 0
        %420 = vmatpush1.bf16.msra.mxu0 0
        %421 = vmatprep.subr.bf16.mxu0 0
        %422 = vmatpush1.bf16.msra.mxu0 0
        %423 = vmatprep.subr.bf16.mxu0 0
        %424 = vmatpush1.bf16.msra.mxu0 0
        %425 = vmatprep.subr.bf16.mxu0 0
        %426 = vmatpush1.bf16.msra.mxu0 0
        %427 = vmatprep.subr.bf16.mxu0 0
        %428 = vmatpush1.bf16.msra.mxu0 0
        %429 = vmatprep.mubr.bf16.mxu0 0
        %430 = vmatmul.mubr.bf16.gmra.mrb[0].mxu0 %v283
        %v431 = vpop.f32.mrb[0].mxu0
        %v432 = vadd.f32 0.5, %v431
        %v433 = vpop.f32.mrb[0].mxu0
        %v434 = vpop.f32.mrb[0].mxu0
        %v435 = vadd.f32 0.5, %v434
        %v436 = vpop.f32.mrb[0].mxu0
        %437 = vdwg.mxu0
        %v438 = vfloor.f32 %v432
        %v439 = vfloor.f32 %v435
        %v440 = vmax.f32 %v438, 0.0
        %v441 = vmax.f32 %v439, 0.0
        %v442 = vmin.f32 %v440, 255.0
        %v443 = vmin.f32 %v441, 255.0
        %v444 = vcvt.f32.s32.to.zero.pseudo %v442
        %v445 = vcvt.f32.s32.to.zero.pseudo %v443
        %v446 = vpack.c.b16 %v444, %v444
        %v447 = vpack.c.b8 %v446, %v446
        %v448 = vpack.c.b16 %v445, %v445
        %v449 = vpack.c.b8 %v448, %v448
        %s450 = scalar_lea.vmem %s164, 8 [#allocation2]
        %451 = vst.msk [vmem:[%s450] sm:$0x3] %vm338, %v447
        %452 = vst.msk [vmem:[%s450 + $0x2] sm:$0x3] %vm338, %v449
        %453 = vmatprep.subr.bf16.mxu0 0
        %454 = vmatpush1.bf16.msra.mxu0 %v276
        %455 = vmatprep.subr.bf16.mxu0 0
        %456 = vmatpush1.bf16.msra.mxu0 0
        %457 = vmatprep.subr.bf16.mxu0 0
        %458 = vmatpush1.bf16.msra.mxu0 0
        %459 = vmatprep.subr.bf16.mxu0 0
        %460 = vmatpush1.bf16.msra.mxu0 0
        %461 = vmatprep.subr.bf16.mxu0 0
        %462 = vmatpush1.bf16.msra.mxu0 0
        %463 = vmatprep.subr.bf16.mxu0 0
        %464 = vmatpush1.bf16.msra.mxu0 0
        %465 = vmatprep.subr.bf16.mxu0 0
        %466 = vmatpush1.bf16.msra.mxu0 0
        %467 = vmatprep.subr.bf16.mxu0 0
        %468 = vmatpush1.bf16.msra.mxu0 0
        %469 = vmatprep.subr.bf16.mxu0 0
        %470 = vmatpush1.bf16.msra.mxu0 0
        %471 = vmatprep.subr.bf16.mxu0 0
        %472 = vmatpush1.bf16.msra.mxu0 0
        %473 = vmatprep.subr.bf16.mxu0 0
        %474 = vmatpush1.bf16.msra.mxu0 0
        %475 = vmatprep.subr.bf16.mxu0 0
        %476 = vmatpush1.bf16.msra.mxu0 0
        %477 = vmatprep.subr.bf16.mxu0 0
        %478 = vmatpush1.bf16.msra.mxu0 0
        %479 = vmatprep.subr.bf16.mxu0 0
        %480 = vmatpush1.bf16.msra.mxu0 0
        %481 = vmatprep.subr.bf16.mxu0 0
        %482 = vmatpush1.bf16.msra.mxu0 0
        %483 = vmatprep.subr.bf16.mxu0 0
        %484 = vmatpush1.bf16.msra.mxu0 0
        %485 = vmatprep.mubr.bf16.mxu0 0
        %486 = vmatmul.mubr.bf16.gmra.mrb[0].mxu0 %v283
        %v487 = vpop.f32.mrb[0].mxu0
        %v488 = vadd.f32 0.5, %v487
        %v489 = vpop.f32.mrb[0].mxu0
        %v490 = vpop.f32.mrb[0].mxu0
        %v491 = vadd.f32 0.5, %v490
        %v492 = vpop.f32.mrb[0].mxu0
        %493 = vdwg.mxu0
        %v494 = vfloor.f32 %v488
        %v495 = vfloor.f32 %v491
        %v496 = vmax.f32 %v494, 0.0
        %v497 = vmax.f32 %v495, 0.0
        %v498 = vmin.f32 %v496, 255.0
        %v499 = vmin.f32 %v497, 255.0
        %v500 = vcvt.f32.s32.to.zero.pseudo %v498
        %v501 = vcvt.f32.s32.to.zero.pseudo %v499
        %v502 = vpack.c.b16 %v500, %v500
        %v503 = vpack.c.b8 %v502, %v502
        %v504 = vpack.c.b16 %v501, %v501
        %v505 = vpack.c.b8 %v504, %v504
        %s506 = scalar_lea.vmem %s164, 12 [#allocation2]
        %507 = vst.msk [vmem:[%s506] sm:$0x3] %vm338, %v503
        %508 = vst.msk [vmem:[%s506 + $0x2] sm:$0x3] %vm338, %v505
        %s509 = sand.u32 %s93, 1
        %s510 = scalar_lea.sflag [#allocation3], %s509
        %s511 = sand.u32 %s93, 1
        %s512 = smul.addr %s511, 16
        %s513 = scalar_lea.vmem [#allocation2], %s512
        // Predicated region
        $region33: #{tpu_custom_call.1} parent=31 // pred_check
          %p514 = pneg %p103
        $region34: #{tpu_custom_call.1} parent=31 // pred_check_branch
          %516 = sbr.rel (%p514) target = $region36
        $region35: #{tpu_custom_call.1} parent=31 // pred_region
          %s517 = smul.u32 4, %s17
          %s519 = ssub.s32 256, 256
          %520 = vsyncadd %s510, %s519
          %s521 = smul.addr %s517, 2
          %s522 = smul.addr %s521, 32
          %s523 = scalar_lea.hbm %s3, %s522
          %s524 = sshll.u32 %s513, 4
          %s525 = int_to_ptr.vmem [resolvable:$true] %s524
          %530 = dma.vmem_to_hbm [thread:$0]  %s525, 256, %s523, %s510, 32, 32, 2
        $region36: #{tpu_custom_call.1} parent=31 // pred_fallthru
          _
      $region32: #{tpu_custom_call.1} parent=5 // pred_fallthru
        _
      %p531 = scmp.le.s32.totalorder 2, %s12
      // Predicated region
      $region37: #{tpu_custom_call.1} parent=5 // pred_check
        %p532 = pneg %p531
      $region38: #{tpu_custom_call.1} parent=5 // pred_check_branch
        %534 = sbr.rel (%p532) target = $region40
      $region39: #{tpu_custom_call.1} parent=5 // pred_region
        %s535 = ssub.s32 %s12, 2
        // Predicated region
        $region41: #{tpu_custom_call.1} parent=39 // pred_check
          %p536 = pneg %p109
        $region42: #{tpu_custom_call.1} parent=39 // pred_check_branch
          %538 = sbr.rel (%p536) target = $region44
        $region43: #{tpu_custom_call.1} parent=39 // pred_region
          %s539 = sand.u32 %s94, 1
          %s540 = scalar_lea.sflag [#allocation3], %s539
          %s541 = sand.u32 %s94, 1
          %s542 = smul.addr %s541, 16
          %s543 = scalar_lea.vmem [#allocation2], %s542
          %544 = dma.done %s540, 256
        $region44: #{tpu_custom_call.1} parent=39 // pred_fallthru
          _
      $region40: #{tpu_custom_call.1} parent=5 // pred_fallthru
        _
    $region6: #{tpu_custom_call.1} parent=1 // loop_footer
      %s16 = sadd.s32 1, %s12
    $region7: #{tpu_custom_call.1} parent=1 // loop_footer_branch
      %11 = sbr.rel target = $region3
    $region8: #{tpu_custom_call.1} parent=1 // loop_exit
      _
    %545 = vsyncpa [#allocation3], 1
    %s546 = scalar_lea.sflag [#allocation3], 1
    %547 = vsyncpa %s546, 1

</llo_original>
